<compile_context>
chip_gen: v7x
topology: tpu7x:2x2x1
jax: 0.10.0
libtpu: 0.0.40
codegen_flags: <defaults>
</compile_context>

<pallas_src>
import jax
import jax.numpy as jnp
from jax.experimental import pallas as pl
from jax.experimental.pallas import tpu as pltpu


def _round_up(x, m):
    return (x + m - 1) // m * m


# --------------------------------------------------------------------------
# Kernel: one batch tile of  out = ReLU(x @ W1 + b1) @ W2 + b2
# --------------------------------------------------------------------------
def mlp_kernel(x_ref, w1_ref, b1_ref, w2_ref, b2_ref, o_ref):
    # fc1 on the MXU (bf16 inputs, f32 accumulate).
    h = jnp.dot(x_ref[...], w1_ref[...], preferred_element_type=jnp.float32)
    # Bias + ReLU on the VPU in f32.
    h = jnp.maximum(h + b1_ref[...], 0.0)
    # fc2: activation back to the MXU in the weight dtype, f32 accumulate.
    out = jnp.dot(h.astype(w2_ref.dtype), w2_ref[...],
                  preferred_element_type=jnp.float32)
    o_ref[...] = (out + b2_ref[...]).astype(o_ref.dtype)


# --------------------------------------------------------------------------
# One-time parameter preparation (hoisted out of the per-call wrapper).
# Weights stored as (in, out) = transpose of PyTorch's (out, in), so
# h = x @ W1 + b1 matches nn.Linear's x @ W.T + b exactly.
# --------------------------------------------------------------------------
def prepare_params(w1, b1, w2, b2, *, compute_dtype=jnp.bfloat16):
    """Pad hidden / output feature axes to 128 lanes and cast once.

    Returns a dict consumed by `rnn_forward`.  K (input features) is kept
    native; only H and N are lane-padded (zero padding is exact: extra H
    columns contribute ReLU(0)=0, extra N columns are sliced off / ignored).
    """
    K, H = w1.shape
    N = w2.shape[1]
    H_p = _round_up(H, 128)
    N_p = _round_up(N, 128)

    w1p = jnp.zeros((K, H_p), compute_dtype).at[:, :H].set(w1.astype(compute_dtype))
    b1p = jnp.zeros((1, H_p), jnp.float32).at[:, :H].set(b1.reshape(1, H).astype(jnp.float32))
    w2p = jnp.zeros((H_p, N_p), compute_dtype).at[:H, :N].set(w2.astype(compute_dtype))
    b2p = jnp.zeros((1, N_p), jnp.float32).at[:, :N].set(b2.reshape(1, N).astype(jnp.float32))
    return dict(w1=w1p, b1=b1p, w2=w2p, b2=b2p,
                K=K, H=H, N=N, H_p=H_p, N_p=N_p,
                compute_dtype=compute_dtype)


def _choose_batch_tile(B, tile_b):
    """Pick a batch tile: big tiles for big B (amortize per-step overhead),
    16-row granule for tiny B (bf16 sublane packing), and an even grid length
    when possible so v7x's 2 TensorCores are both used / balanced."""
    if B <= tile_b:
        if B > 128:
            # Split into two tiles -> grid length 2 (both TCs on v7x).
            return _round_up(pl.cdiv(B, 2), 16)
        return _round_up(B, 16)
    n = pl.cdiv(B, tile_b)
    if n % 2 == 1:
        alt = _round_up(pl.cdiv(B, n + 1), 16)  # one more tile -> even grid
        if alt >= 128:
            return alt
    return tile_b


# --------------------------------------------------------------------------
# Forward pass (call with the same prepared params many times).
# --------------------------------------------------------------------------
def rnn_forward(x, params, *, tile_b=512, out_dtype=None, return_padded=False):
    """x: (B, input_num).  Flatten any time-step / micro-batch loop into B.

    out_dtype: dtype of the kernel's HBM writeback (default x.dtype; pass
               jnp.bfloat16 to halve output bandwidth).
    return_padded: if True, return the lane-dense (B_p, N_p) slab and let the
               consumer slice (skips one read+write pass over the output).
    """
    B, K = x.shape
    assert K == params["K"], f"input_num mismatch: {K} vs {params['K']}"
    N, N_p = params["N"], params["N_p"]
    compute_dtype = params["compute_dtype"]
    out_dtype = x.dtype if out_dtype is None else out_dtype

    tb = _choose_batch_tile(B, tile_b)
    B_p = _round_up(B, tb)

    # Per-call input prep: cast only (and row-pad if B is not a tile multiple).
    if B_p == B:
        xp = x.astype(compute_dtype)
    else:
        xp = jnp.zeros((B_p, K), compute_dtype).at[:B, :].set(x.astype(compute_dtype))

    grid = (B_p // tb,)
    out = pl.pallas_call(
        mlp_kernel,
        out_shape=jax.ShapeDtypeStruct((B_p, N_p), out_dtype),
        grid=grid,
        in_specs=[
            # Batch tile streams; K kept native (block last dim == array dim).
            pl.BlockSpec((tb, K), lambda i: (i, 0)),
            # Weights / biases: constant block index -> resident in VMEM,
            # DMA'd once while batch tiles stream through.
            pl.BlockSpec((K, params["H_p"]), lambda i: (0, 0)),
            pl.BlockSpec((1, params["H_p"]), lambda i: (0, 0)),
            pl.BlockSpec((params["H_p"], N_p), lambda i: (0, 0)),
            pl.BlockSpec((1, N_p), lambda i: (0, 0)),
        ],
        out_specs=pl.BlockSpec((tb, N_p), lambda i: (i, 0)),
        compiler_params=pltpu.CompilerParams(
            dimension_semantics=("parallel",)),
    )(xp, params["w1"], params["b1"], params["w2"], params["b2"])

    if return_padded:
        return out
    return out[:B, :N]


# --------------------------------------------------------------------------
# Init + reference
# --------------------------------------------------------------------------
def init_params(key, input_num, hidden_size, output_num, dtype=jnp.float32):
    """Deterministic init mimicking nn.Linear's uniform(-1/sqrt(in), 1/sqrt(in))."""
    k1, k2, k3, k4 = jax.random.split(key, 4)
    bound1 = 1.0 / (input_num ** 0.5)
    bound2 = 1.0 / (hidden_size ** 0.5)
    w1 = jax.random.uniform(k1, (input_num, hidden_size), dtype, -bound1, bound1)
    b1 = jax.random.uniform(k2, (1, hidden_size), dtype, -bound1, bound1)
    w2 = jax.random.uniform(k3, (hidden_size, output_num), dtype, -bound2, bound2)
    b2 = jax.random.uniform(k4, (1, output_num), dtype, -bound2, bound2)
    return w1, b1, w2, b2


def reference(x, w1, b1, w2, b2, compute_dtype=jnp.bfloat16):
    """Pure-JAX reference with the same bf16-input / f32-accumulate numerics.
    NOTE: true f32 PyTorch output differs slightly from the bf16-MXU path; use
    compute_dtype=jnp.float32 in prepare_params for an exact-precision path."""
    h = jnp.dot(x.astype(compute_dtype), w1.astype(compute_dtype),
                preferred_element_type=jnp.float32) + b1
    h = jnp.maximum(h, 0.0)
    return jnp.dot(h.astype(compute_dtype), w2.astype(compute_dtype),
                   preferred_element_type=jnp.float32) + b2


if __name__ == "__main__":
    input_num = 64
    hidden_size = 128
    output_num = 32

    key = jax.random.PRNGKey(0)
    kx1, kx2, kp = jax.random.split(key, 3)
    w1, b1, w2, b2 = init_params(kp, input_num, hidden_size, output_num)

    # One-time parameter prep (pad + cast), reused across calls.
    params = prepare_params(w1, b1, w2, b2, compute_dtype=jnp.bfloat16)

    # Case 1: tiny batch (matches the original spec's usage).
    x_small = jax.random.normal(kx1, (8, input_num), jnp.float32)
    out_small = rnn_forward(x_small, params)
    jax.block_until_ready(out_small)
    ref_small = reference(x_small, w1, b1, w2, b2)
    assert out_small.shape == (8, output_num)
    assert jnp.allclose(out_small, ref_small, atol=1e-3, rtol=1e-3)

    # Case 2: larger batch (many time-steps / micro-batches flattened in):
    # exercises the multi-tile parallel grid with VMEM-resident weights.
    x_big = jax.random.normal(kx2, (1024, input_num), jnp.float32)
    out_big = rnn_forward(x_big, params)
    jax.block_until_ready(out_big)
    ref_big = reference(x_big, w1, b1, w2, b2)
    assert out_big.shape == (1024, output_num)
    assert jnp.allclose(out_big, ref_big, atol=1e-3, rtol=1e-3)

    # Case 3: low-overhead output path (padded lane-dense slab, bf16 writeback).
    out_pad = rnn_forward(x_big, params, out_dtype=jnp.bfloat16, return_padded=True)
    jax.block_until_ready(out_pad)
    assert out_pad.shape[1] == params["N_p"]
    assert jnp.allclose(out_pad[:1024, :output_num].astype(jnp.float32),
                        ref_big, atol=2e-2, rtol=2e-2)

    print("KERNEL_OK")
</pallas_src>

<mosaic_0001>
module attributes {stable_mosaic.version = 11 : i64} {
  func.func @mlp_kernel(%arg0: i32, %arg1: memref<16x64xbf16, #tpu.memory_space<vmem>>, %arg2: memref<64x128xbf16, #tpu.memory_space<vmem>>, %arg3: memref<1x128xf32, #tpu.memory_space<vmem>>, %arg4: memref<128x128xbf16, #tpu.memory_space<vmem>>, %arg5: memref<1x128xf32, #tpu.memory_space<vmem>>, %arg6: memref<16x128xf32, #tpu.memory_space<vmem>>) attributes {dimension_semantics = [#tpu.dimension_semantics<parallel>], iteration_bounds = array<i64: 1>, scalar_prefetch = 0 : i64, scratch_operands = 0 : i64, tpu.core_type = #tpu.core_type<tc>, window_params = [{transform_indices = @transform_0, window_bounds = array<i64: 16, 64>}, {pipeline_mode = #tpu.pipeline_mode<synchronous>, transform_indices = @transform_1, window_bounds = array<i64: 64, 128>}, {pipeline_mode = #tpu.pipeline_mode<synchronous>, transform_indices = @transform_2, window_bounds = array<i64: 1, 128>}, {pipeline_mode = #tpu.pipeline_mode<synchronous>, transform_indices = @transform_3, window_bounds = array<i64: 128, 128>}, {pipeline_mode = #tpu.pipeline_mode<synchronous>, transform_indices = @transform_4, window_bounds = array<i64: 1, 128>}, {transform_indices = @transform_5, window_bounds = array<i64: 16, 128>}]} {
    %c0 = arith.constant 0 : index
    %c0_0 = arith.constant 0 : index
    %0 = vector.load %arg1[%c0, %c0_0] : memref<16x64xbf16, #tpu.memory_space<vmem>>, vector<16x64xbf16>
    %c0_1 = arith.constant 0 : index
    %c0_2 = arith.constant 0 : index
    %1 = vector.load %arg2[%c0_1, %c0_2] : memref<64x128xbf16, #tpu.memory_space<vmem>>, vector<64x128xbf16>
    %cst = arith.constant dense<0.000000e+00> : vector<16x128xf32>
    %2 = tpu.matmul %0, %1, %cst {dimension_numbers = #tpu.dot_dimension_numbers<[1], [0], [0], [1], [0, 0, 1, 1], [], []>} : vector<16x64xbf16>, vector<64x128xbf16>, vector<16x128xf32> -> vector<16x128xf32>
    %c0_3 = arith.constant 0 : index
    %c0_4 = arith.constant 0 : index
    %3 = vector.load %arg3[%c0_3, %c0_4] : memref<1x128xf32, #tpu.memory_space<vmem>>, vector<1x128xf32>
    %4 = vector.broadcast %3 : vector<1x128xf32> to vector<16x128xf32>
    %5 = arith.addf %2, %4 : vector<16x128xf32>
    %cst_5 = arith.constant 0.000000e+00 : f32
    %6 = vector.broadcast %cst_5 : f32 to vector<16x128xf32>
    %7 = arith.maximumf %5, %6 : vector<16x128xf32>
    %8 = arith.truncf %7 : vector<16x128xf32> to vector<16x128xbf16>
    %c0_6 = arith.constant 0 : index
    %c0_7 = arith.constant 0 : index
    %9 = vector.load %arg4[%c0_6, %c0_7] : memref<128x128xbf16, #tpu.memory_space<vmem>>, vector<128x128xbf16>
    %cst_8 = arith.constant dense<0.000000e+00> : vector<16x128xf32>
    %10 = tpu.matmul %8, %9, %cst_8 {dimension_numbers = #tpu.dot_dimension_numbers<[1], [0], [0], [1], [0, 0, 1, 1], [], []>} : vector<16x128xbf16>, vector<128x128xbf16>, vector<16x128xf32> -> vector<16x128xf32>
    %c0_9 = arith.constant 0 : index
    %c0_10 = arith.constant 0 : index
    %11 = vector.load %arg5[%c0_9, %c0_10] : memref<1x128xf32, #tpu.memory_space<vmem>>, vector<1x128xf32>
    %12 = vector.broadcast %11 : vector<1x128xf32> to vector<16x128xf32>
    %13 = arith.addf %10, %12 : vector<16x128xf32>
    %c0_11 = arith.constant 0 : index
    %c0_12 = arith.constant 0 : index
    %14 = vector.load %arg6[%c0_11, %c0_12] : memref<16x128xf32, #tpu.memory_space<vmem>>, vector<16x128xf32>
    tpu.vector_store %arg6[%c0_11, %c0_12], %13 {strides = array<i32>} : memref<16x128xf32, #tpu.memory_space<vmem>>, vector<16x128xf32>,
    return
  }
  func.func @transform_0(%arg0: i32) -> (i32, i32) {
    %c0_i32 = arith.constant 0 : i32
    %c0_i32_0 = arith.constant 0 : i32
    return %arg0, %c0_i32 : i32, i32
  }
  func.func @transform_1(%arg0: i32) -> (i32, i32) {
    %c0_i32 = arith.constant 0 : i32
    %c0_i32_0 = arith.constant 0 : i32
    %c0_i32_1 = arith.constant 0 : i32
    return %c0_i32, %c0_i32_0 : i32, i32
  }
  func.func @transform_2(%arg0: i32) -> (i32, i32) {
    %c0_i32 = arith.constant 0 : i32
    %c0_i32_0 = arith.constant 0 : i32
    %c0_i32_1 = arith.constant 0 : i32
    return %c0_i32, %c0_i32_0 : i32, i32
  }
  func.func @transform_3(%arg0: i32) -> (i32, i32) {
    %c0_i32 = arith.constant 0 : i32
    %c0_i32_0 = arith.constant 0 : i32
    %c0_i32_1 = arith.constant 0 : i32
    return %c0_i32, %c0_i32_0 : i32, i32
  }
  func.func @transform_4(%arg0: i32) -> (i32, i32) {
    %c0_i32 = arith.constant 0 : i32
    %c0_i32_0 = arith.constant 0 : i32
    %c0_i32_1 = arith.constant 0 : i32
    return %c0_i32, %c0_i32_0 : i32, i32
  }
  func.func @transform_5(%arg0: i32) -> (i32, i32) {
    %c0_i32 = arith.constant 0 : i32
    %c0_i32_0 = arith.constant 0 : i32
    return %arg0, %c0_i32 : i32, i32
  }
}

</mosaic_0001>

<llo_original>
// kernel: tpu_custom_call.1
$region0: #{tpu_custom_call.1}
  #allocation0 [shape = 'u32[]', space=smem, size = 0x4, offset = 0x4, fixed_abs, tag = 'smem constant byte address 0x4 - core index']
  #allocation1 [shape = 'u32[144,128]{1,0:T(1,128)}', space=vmem, size = 0x12000, scoped, tag = 'internal scratch']
  %s0 = inlined_call_operand.hbm [shape: bf16[16,64], index: 0, kind: input, shape index: {}]
  %s1 = inlined_call_operand.hbm [shape: bf16[64,128], index: 1, kind: input, shape index: {}]
  %s2 = inlined_call_operand.vmem [shape: f32[1,128], index: 2, kind: input, shape index: {}]
  %s3 = inlined_call_operand.hbm [shape: bf16[128,128], index: 3, kind: input, shape index: {}]
  %s4 = inlined_call_operand.vmem [shape: f32[1,128], index: 4, kind: input, shape index: {}]
  %s5 = inlined_call_operand.hbm [shape: f32[16,128], index: 5, kind: output, shape index: {}]
  %s6 = sld [smem:[#allocation0]]
  $region42: #{tpu_custom_call.1} parent=0
    _
  %s8 = ssub.s32 1, %s6
  %s9 = scalar_select 0, %s8, %s6
  $region1: #{tpu_custom_call.1} parent=0
    #allocation2 [shape = 'u8[4096]{0}', space=vmem, size = 0x1000, scoped, tag = 'input window, operand 0, single buffered']
    #allocation3 [shape = 's32[1]{0}', space=sflag, size = 0x4, scoped, tag = 'scoped memory for tpu_custom_call.1']
    #allocation4 [shape = 's32[1]{0}', space=sflag, size = 0x4, scoped, tag = 'scoped memory for tpu_custom_call.1']
    #allocation5 [shape = 'u8[16384]{0}', space=vmem, size = 0x4000, scoped, tag = 'input window, operand 1, single buffered']
    #allocation6 [shape = 's32[1]{0}', space=sflag, size = 0x4, scoped, tag = 'scoped memory for tpu_custom_call.1']
    #allocation7 [shape = 'u8[32768]{0}', space=vmem, size = 0x8000, scoped, tag = 'input window, operand 3, single buffered']
    #allocation8 [shape = 'u8[8192]{0}', space=vmem, size = 0x2000, scoped, tag = 'output window, operand 0, single buffered']
    %10 = vsyncpa [#allocation3], 0
    %11 = vsyncpa [#allocation6], 0
    %12 = vsyncpa [#allocation4], 0
    // Predicated region
    $region2: #{tpu_custom_call.1} parent=1 // pred_check
      _
    $region3: #{tpu_custom_call.1} parent=1 // pred_check_branch
      %14 = sbr.rel (0) target = $region5
    $region4: #{tpu_custom_call.1} parent=1 // pred_region
      %s16 = ssub.s32 128, 128
      %17 = vsyncadd [#allocation3], %s16
      %s18 = sshll.u32 [#allocation2], 4
      %s19 = int_to_ptr.vmem [resolvable:$true] %s18
      %24 = dma.hbm_to_vmem [thread:$0]  %s0, 128, %s19, [#allocation3], 64, 64, 4
    $region5: #{tpu_custom_call.1} parent=1 // pred_fallthru
      _
    // Predicated region
    $region6: #{tpu_custom_call.1} parent=1 // pred_check
      _
    $region7: #{tpu_custom_call.1} parent=1 // pred_check_branch
      %26 = sbr.rel (0) target = $region9
    $region8: #{tpu_custom_call.1} parent=1 // pred_region
      %s28 = ssub.s32 512, 512
      %29 = vsyncadd [#allocation6], %s28
      %s30 = sshll.u32 [#allocation5], 4
      %s31 = int_to_ptr.vmem [resolvable:$true] %s30
      %36 = dma.hbm_to_vmem [thread:$0]  %s1, 512, %s31, [#allocation6], 64, 64, 4
    $region9: #{tpu_custom_call.1} parent=1 // pred_fallthru
      _
    // Predicated region
    $region10: #{tpu_custom_call.1} parent=1 // pred_check
      _
    $region11: #{tpu_custom_call.1} parent=1 // pred_check_branch
      %38 = sbr.rel (0) target = $region13
    $region12: #{tpu_custom_call.1} parent=1 // pred_region
      _
    $region13: #{tpu_custom_call.1} parent=1 // pred_fallthru
      _
    // Predicated region
    $region14: #{tpu_custom_call.1} parent=1 // pred_check
      _
    $region15: #{tpu_custom_call.1} parent=1 // pred_check_branch
      %40 = sbr.rel (0) target = $region17
    $region16: #{tpu_custom_call.1} parent=1 // pred_region
      %s42 = ssub.s32 1024, 1024
      %43 = vsyncadd [#allocation6], %s42
      %s44 = sshll.u32 [#allocation7], 4
      %s45 = int_to_ptr.vmem [resolvable:$true] %s44
      %50 = dma.hbm_to_vmem [thread:$0]  %s3, 1024, %s45, [#allocation6], 64, 64, 4
    $region17: #{tpu_custom_call.1} parent=1 // pred_fallthru
      _
    // Predicated region
    $region18: #{tpu_custom_call.1} parent=1 // pred_check
      _
    $region19: #{tpu_custom_call.1} parent=1 // pred_check_branch
      %52 = sbr.rel (0) target = $region21
    $region20: #{tpu_custom_call.1} parent=1 // pred_region
      _
    $region21: #{tpu_custom_call.1} parent=1 // pred_fallthru
      _
    // Predicated region
    $region22: #{tpu_custom_call.1} parent=1 // pred_check
      _
    $region23: #{tpu_custom_call.1} parent=1 // pred_check_branch
      %54 = sbr.rel (0) target = $region25
    $region24: #{tpu_custom_call.1} parent=1 // pred_region
      %55 = dma.done [#allocation3], 128
    $region25: #{tpu_custom_call.1} parent=1 // pred_fallthru
      _
    // Predicated region
    $region26: #{tpu_custom_call.1} parent=1 // pred_check
      _
    $region27: #{tpu_custom_call.1} parent=1 // pred_check_branch
      %57 = sbr.rel (0) target = $region29
    $region28: #{tpu_custom_call.1} parent=1 // pred_region
      %58 = dma.done [#allocation6], 512
    $region29: #{tpu_custom_call.1} parent=1 // pred_fallthru
      _
    // Predicated region
    $region30: #{tpu_custom_call.1} parent=1 // pred_check
      _
    $region31: #{tpu_custom_call.1} parent=1 // pred_check_branch
      %60 = sbr.rel (0) target = $region33
    $region32: #{tpu_custom_call.1} parent=1 // pred_region
      %61 = dma.done [#allocation6], 1024
    $region33: #{tpu_custom_call.1} parent=1 // pred_fallthru
      _
    %v63 = vld [vmem:[#allocation2] sm:$0xf]
    %v64 = vld [vmem:[#allocation2 + $0x4] sm:$0xf]
    %v65 = vld [vmem:[#allocation5] sm:$0xf]
    %v66 = vld [vmem:[#allocation5 + $0x4] sm:$0xf]
    %v67 = vld [vmem:[#allocation5 + $0x8] sm:$0xf]
    %v68 = vld [vmem:[#allocation5 + $0xc] sm:$0xf]
    %v69 = vld [vmem:[#allocation5 + $0x10] sm:$0xf]
    %v70 = vld [vmem:[#allocation5 + $0x14] sm:$0xf]
    %v71 = vld [vmem:[#allocation5 + $0x18] sm:$0xf]
    %v72 = vld [vmem:[#allocation5 + $0x1c] sm:$0xf]
    %v73 = vld [vmem:[%s2] sm:$0x1]
    %v75 = vlaneseq
    %v76 = vshrl.u32 %v75, 7
    %v77 = vsub.s32 0, %v76
    %v78 = vrot.slane %v73, %v77
    %v82 = vunpack.c.l.b16 %v63
    %v83 = vunpack.c.l.b16 %v64
    %v84 = vpack.c.b16 %v83, %v82
    %v93 = vunpack.c.l.b16 %v65
    %v94 = vunpack.c.l.b16 %v66
    %v95 = vunpack.c.l.b16 %v67
    %v96 = vunpack.c.l.b16 %v68
    %v97 = vunpack.c.l.b16 %v69
    %v98 = vunpack.c.l.b16 %v70
    %v99 = vunpack.c.l.b16 %v71
    %v100 = vunpack.c.l.b16 %v72
    %v101 = vpack.c.b16 %v94, %v93
    %v102 = vpack.c.b16 %v96, %v95
    %v103 = vpack.c.b16 %v98, %v97
    %v104 = vpack.c.b16 %v100, %v99
    %vm109 = vcmask 523264
    %v111 = vsel %vm109, %v84, 0
    %113 = vmatprep.subr.bf16.mxu0 0
    %114 = vmatpush1.bf16.msra.mxu0 %v101
    %115 = vmatprep.subr.bf16.mxu0 0
    %116 = vmatpush1.bf16.msra.mxu0 %v102
    %117 = vmatprep.subr.bf16.mxu0 0
    %118 = vmatpush1.bf16.msra.mxu0 %v103
    %119 = vmatprep.subr.bf16.mxu0 0
    %120 = vmatpush1.bf16.msra.mxu0 %v104
    %121 = vmatprep.subr.bf16.mxu0 0
    %122 = vmatpush1.bf16.msra.mxu0 0
    %123 = vmatprep.subr.bf16.mxu0 0
    %124 = vmatpush1.bf16.msra.mxu0 0
    %125 = vmatprep.subr.bf16.mxu0 0
    %126 = vmatpush1.bf16.msra.mxu0 0
    %127 = vmatprep.subr.bf16.mxu0 0
    %128 = vmatpush1.bf16.msra.mxu0 0
    %129 = vmatprep.subr.bf16.mxu0 0
    %130 = vmatpush1.bf16.msra.mxu0 0
    %131 = vmatprep.subr.bf16.mxu0 0
    %132 = vmatpush1.bf16.msra.mxu0 0
    %133 = vmatprep.subr.bf16.mxu0 0
    %134 = vmatpush1.bf16.msra.mxu0 0
    %135 = vmatprep.subr.bf16.mxu0 0
    %136 = vmatpush1.bf16.msra.mxu0 0
    %137 = vmatprep.subr.bf16.mxu0 0
    %138 = vmatpush1.bf16.msra.mxu0 0
    %139 = vmatprep.subr.bf16.mxu0 0
    %140 = vmatpush1.bf16.msra.mxu0 0
    %141 = vmatprep.subr.bf16.mxu0 0
    %142 = vmatpush1.bf16.msra.mxu0 0
    %143 = vmatprep.subr.bf16.mxu0 0
    %144 = vmatpush1.bf16.msra.mxu0 0
    %145 = vmatprep.mubr.bf16.mxu0 0
    %146 = vmatmul.mubr.bf16.gmra.mrb[0].mxu0 %v111
    %v147 = vpop.f32.mrb[0].mxu0
    %v148 = vadd.f32 %v78, %v147
    %v149 = vpop.f32.mrb[0].mxu0
    %v150 = vpop.f32.mrb[0].mxu0
    %v151 = vadd.f32 %v78, %v150
    %v152 = vpop.f32.mrb[0].mxu0
    %153 = vdwg.mxu0
    %v154 = vmax.f32 %v148, 0.0
    %v155 = vmax.f32 %v151, 0.0
    %v156 = vpack.c.bf16 %v155, %v154
    %v157 = vld [vmem:[#allocation7] sm:$0xf]
    %v158 = vld [vmem:[#allocation7 + $0x4] sm:$0xf]
    %v159 = vld [vmem:[#allocation7 + $0x8] sm:$0xf]
    %v160 = vld [vmem:[#allocation7 + $0xc] sm:$0xf]
    %v161 = vld [vmem:[#allocation7 + $0x10] sm:$0xf]
    %v162 = vld [vmem:[#allocation7 + $0x14] sm:$0xf]
    %v163 = vld [vmem:[#allocation7 + $0x18] sm:$0xf]
    %v164 = vld [vmem:[#allocation7 + $0x1c] sm:$0xf]
    %v165 = vld [vmem:[#allocation7 + $0x20] sm:$0xf]
    %v166 = vld [vmem:[#allocation7 + $0x24] sm:$0xf]
    %v167 = vld [vmem:[#allocation7 + $0x28] sm:$0xf]
    %v168 = vld [vmem:[#allocation7 + $0x2c] sm:$0xf]
    %v169 = vld [vmem:[#allocation7 + $0x30] sm:$0xf]
    %v170 = vld [vmem:[#allocation7 + $0x34] sm:$0xf]
    %v171 = vld [vmem:[#allocation7 + $0x38] sm:$0xf]
    %v172 = vld [vmem:[#allocation7 + $0x3c] sm:$0xf]
    %v173 = vld [vmem:[%s4] sm:$0x1]
    %v175 = vlaneseq
    %v176 = vshrl.u32 %v175, 7
    %v177 = vsub.s32 0, %v176
    %v178 = vrot.slane %v173, %v177
    %v196 = vunpack.c.l.b16 %v157
    %v197 = vunpack.c.l.b16 %v158
    %v198 = vunpack.c.l.b16 %v159
    %v199 = vunpack.c.l.b16 %v160
    %v200 = vunpack.c.l.b16 %v161
    %v201 = vunpack.c.l.b16 %v162
    %v202 = vunpack.c.l.b16 %v163
    %v203 = vunpack.c.l.b16 %v164
    %v204 = vunpack.c.l.b16 %v165
    %v205 = vunpack.c.l.b16 %v166
    %v206 = vunpack.c.l.b16 %v167
    %v207 = vunpack.c.l.b16 %v168
    %v208 = vunpack.c.l.b16 %v169
    %v209 = vunpack.c.l.b16 %v170
    %v210 = vunpack.c.l.b16 %v171
    %v211 = vunpack.c.l.b16 %v172
    %v212 = vpack.c.b16 %v197, %v196
    %v213 = vpack.c.b16 %v199, %v198
    %v214 = vpack.c.b16 %v201, %v200
    %v215 = vpack.c.b16 %v203, %v202
    %v216 = vpack.c.b16 %v205, %v204
    %v217 = vpack.c.b16 %v207, %v206
    %v218 = vpack.c.b16 %v209, %v208
    %v219 = vpack.c.b16 %v211, %v210
    %228 = vmatprep.subr.bf16.mxu0 0
    %229 = vmatpush1.bf16.msra.mxu0 %v212
    %230 = vmatprep.subr.bf16.mxu0 0
    %231 = vmatpush1.bf16.msra.mxu0 %v213
    %232 = vmatprep.subr.bf16.mxu0 0
    %233 = vmatpush1.bf16.msra.mxu0 %v214
    %234 = vmatprep.subr.bf16.mxu0 0
    %235 = vmatpush1.bf16.msra.mxu0 %v215
    %236 = vmatprep.subr.bf16.mxu0 0
    %237 = vmatpush1.bf16.msra.mxu0 %v216
    %238 = vmatprep.subr.bf16.mxu0 0
    %239 = vmatpush1.bf16.msra.mxu0 %v217
    %240 = vmatprep.subr.bf16.mxu0 0
    %241 = vmatpush1.bf16.msra.mxu0 %v218
    %242 = vmatprep.subr.bf16.mxu0 0
    %243 = vmatpush1.bf16.msra.mxu0 %v219
    %244 = vmatprep.subr.bf16.mxu0 0
    %245 = vmatpush1.bf16.msra.mxu0 0
    %246 = vmatprep.subr.bf16.mxu0 0
    %247 = vmatpush1.bf16.msra.mxu0 0
    %248 = vmatprep.subr.bf16.mxu0 0
    %249 = vmatpush1.bf16.msra.mxu0 0
    %250 = vmatprep.subr.bf16.mxu0 0
    %251 = vmatpush1.bf16.msra.mxu0 0
    %252 = vmatprep.subr.bf16.mxu0 0
    %253 = vmatpush1.bf16.msra.mxu0 0
    %254 = vmatprep.subr.bf16.mxu0 0
    %255 = vmatpush1.bf16.msra.mxu0 0
    %256 = vmatprep.subr.bf16.mxu0 0
    %257 = vmatpush1.bf16.msra.mxu0 0
    %258 = vmatprep.subr.bf16.mxu0 0
    %259 = vmatpush1.bf16.msra.mxu0 0
    %260 = vmatprep.mubr.bf16.mxu0 0
    %261 = vmatmul.mubr.bf16.gmra.mrb[0].mxu0 %v156
    %v262 = vpop.f32.mrb[0].mxu0
    %v263 = vadd.f32 %v178, %v262
    %v264 = vpop.f32.mrb[0].mxu0
    %v265 = vpop.f32.mrb[0].mxu0
    %v266 = vadd.f32 %v178, %v265
    %v267 = vpop.f32.mrb[0].mxu0
    %268 = vdwg.mxu0
    %269 = vst [vmem:[#allocation8] sm:$0xff] %v263
    %270 = vst [vmem:[#allocation8 + $0x8] sm:$0xff] %v266
    // Predicated region
    $region34: #{tpu_custom_call.1} parent=1 // pred_check
      _
    $region35: #{tpu_custom_call.1} parent=1 // pred_check_branch
      %272 = sbr.rel (0) target = $region37
    $region36: #{tpu_custom_call.1} parent=1 // pred_region
      %s274 = ssub.s32 256, 256
      %275 = vsyncadd [#allocation4], %s274
      %s276 = sshll.u32 [#allocation8], 4
      %s277 = int_to_ptr.vmem [resolvable:$true] %s276
      %282 = dma.vmem_to_hbm [thread:$0]  %s277, 256, %s5, [#allocation4], 128, 128, 8
    $region37: #{tpu_custom_call.1} parent=1 // pred_fallthru
      _
    // Predicated region
    $region38: #{tpu_custom_call.1} parent=1 // pred_check
      _
    $region39: #{tpu_custom_call.1} parent=1 // pred_check_branch
      %284 = sbr.rel (0) target = $region41
    $region40: #{tpu_custom_call.1} parent=1 // pred_region
      %285 = dma.done [#allocation4], 256
    $region41: #{tpu_custom_call.1} parent=1 // pred_fallthru
      _
    %286 = vsyncpa [#allocation3], 1
    %287 = vsyncpa [#allocation6], 1
    %288 = vsyncpa [#allocation4], 1

</llo_original>
